<compile_context>
chip_gen: v5e
topology: v5e:2x2
jax: 0.10.0
libtpu: 0.0.40
codegen_flags: <defaults>
</compile_context>

<pallas_src>
import functools

import jax
import jax.numpy as jnp
from jax.experimental import pallas as pl
from jax.experimental.pallas import tpu as pltpu


# ----------------------------- Pallas kernels ------------------------------ #

def _vfl_dense_kernel(logits_ref, out_ref, *, alpha, gamma):
    """Dense ("all targets zero") varifocal partial sum for one batch tile.

    For target==0 the VFL loss is  alpha * sigmoid(x)^gamma * softplus(x);
    the matched-pair correction is added by the pairs kernel.  Writes the
    f32 partial sum for this batch tile (the /num_boxes happens outside so
    num_boxes stays a runtime value).
    """
    x = logits_ref[...].astype(jnp.float32)             # [Bt, Q, C]

    # one exp per element, reused for sigmoid and the stable softplus
    e = jnp.exp(-jnp.abs(x))
    one_pe = 1.0 + e
    inv = pl.reciprocal(one_pe)                          # EUP
    sig = jnp.where(x >= 0.0, inv, e * inv)              # sigmoid(x) (detached weight)
    if gamma == 2.0:
        focal = sig * sig
    else:
        focal = jnp.exp(gamma * jnp.log(sig))
    softplus = jnp.maximum(x, 0.0) + jnp.log(one_pe)     # BCE(x, 0)

    out_ref[...] = jnp.reshape(alpha * jnp.sum(focal * softplus), (1, 1, 1))


def _pairs_kernel(nvalid_ref, boxes_ref, mlogit_ref,
                  l1_ref, giou_ref, corr_ref, *, alpha, gamma, eps=1e-8):
    """Matched-pair losses over a lane-dense [8, N_PAD] box layout
    (rows 0-3: src cxcywh, rows 4-7: tgt cxcywh) plus matched logits
    [1, N_PAD].  Emits three scalars: sum L1, sum (1-GIoU) and the VFL
    matched-pair correction.  Lanes >= n_valid are masked to zero."""
    n_valid = nvalid_ref[0, 0]
    b = boxes_ref[...].astype(jnp.float32)               # [8, N_PAD]
    n_pad = b.shape[1]

    scx, scy, sw, sh = b[0:1, :], b[1:2, :], b[2:3, :], b[3:4, :]
    tcx, tcy, tw, th = b[4:5, :], b[5:6, :], b[6:7, :], b[7:8, :]

    # L1 regression term per pair (sum over 4 coords)
    l1 = (jnp.abs(scx - tcx) + jnp.abs(scy - tcy)
          + jnp.abs(sw - tw) + jnp.abs(sh - th))          # [1, N_PAD]

    # cxcywh -> xyxy
    sx0, sy0 = scx - 0.5 * sw, scy - 0.5 * sh
    sx1, sy1 = scx + 0.5 * sw, scy + 0.5 * sh
    tx0, ty0 = tcx - 0.5 * tw, tcy - 0.5 * th
    tx1, ty1 = tcx + 0.5 * tw, tcy + 0.5 * th

    area_s = (sx1 - sx0) * (sy1 - sy0)
    area_t = (tx1 - tx0) * (ty1 - ty0)

    ix0 = jnp.maximum(sx0, tx0)
    iy0 = jnp.maximum(sy0, ty0)
    ix1 = jnp.minimum(sx1, tx1)
    iy1 = jnp.minimum(sy1, ty1)
    inter = jnp.maximum(ix1 - ix0, 0.0) * jnp.maximum(iy1 - iy0, 0.0)
    union = area_s + area_t - inter
    iou = inter / jnp.maximum(union, eps)                 # [1, N_PAD]

    cx0 = jnp.minimum(sx0, tx0)
    cy0 = jnp.minimum(sy0, ty0)
    cx1 = jnp.maximum(sx1, tx1)
    cy1 = jnp.maximum(sy1, ty1)
    area_c = (cx1 - cx0) * (cy1 - cy0)
    giou = iou - (area_c - union) / jnp.maximum(area_c, eps)

    lane = jax.lax.broadcasted_iota(jnp.int32, (1, n_pad), 1)
    mask = (lane < n_valid).astype(jnp.float32)           # [1, N_PAD]

    l1_ref[...] = jnp.reshape(jnp.sum(l1 * mask), (1, 1))
    giou_ref[...] = jnp.reshape(jnp.sum((1.0 - giou) * mask), (1, 1))

    # ---- VFL correction on the matched (b, q, label) logits ----
    # true term:  iou * (softplus(x) - x*iou)          (target=1, weight=iou)
    # dense term already counted:  alpha * sig(x)^gamma * softplus(x)
    x = mlogit_ref[...].astype(jnp.float32)               # [1, N_PAD]
    e = jnp.exp(-jnp.abs(x))
    one_pe = 1.0 + e
    inv = pl.reciprocal(one_pe)
    sig = jnp.where(x >= 0.0, inv, e * inv)
    if gamma == 2.0:
        focal = sig * sig
    else:
        focal = jnp.exp(gamma * jnp.log(sig))
    softplus = jnp.maximum(x, 0.0) + jnp.log(one_pe)
    corr = iou * (softplus - x * iou) - alpha * focal * softplus
    corr_ref[...] = jnp.reshape(jnp.sum(corr * mask), (1, 1))


# ----------------------------- kernel wrappers ------------------------------ #

def _choose_batch_tile(B, Q, C, itemsize, vmem_budget_bytes=16 << 20,
                       min_grid=2):
    """Largest batch tile that divides B, keeps >= min_grid grid steps
    (so both v7x TensorCores get work) and stays under a VMEM budget
    (double-buffered input tile)."""
    best = 1
    for bt in range(1, B + 1):
        if B % bt != 0:
            continue
        grid = B // bt
        if B >= min_grid and grid < min_grid:
            continue
        if 2 * bt * Q * C * itemsize > vmem_budget_bytes:
            continue
        best = bt
    return best


def vfl_dense_partials_pallas(pred_logits, alpha, gamma):
    """Per-batch-tile partial sums of the dense VFL term, shape [G, 1, 1]."""
    B, Q, C = pred_logits.shape
    itemsize = jnp.dtype(pred_logits.dtype).itemsize
    bt = _choose_batch_tile(B, Q, C, itemsize)
    G = B // bt
    return pl.pallas_call(
        functools.partial(_vfl_dense_kernel, alpha=float(alpha),
                          gamma=float(gamma)),
        out_shape=jax.ShapeDtypeStruct((G, 1, 1), jnp.float32),
        grid=(G,),
        in_specs=[pl.BlockSpec((bt, Q, C), lambda g: (g, 0, 0))],
        out_specs=pl.BlockSpec((1, 1, 1), lambda g: (g, 0, 0)),
        compiler_params=pltpu.CompilerParams(
            dimension_semantics=("parallel",)),
        cost_estimate=pl.CostEstimate(
            flops=10 * B * Q * C,
            transcendentals=3 * B * Q * C,
            bytes_accessed=B * Q * C * itemsize + G * 4),
    )(pred_logits)


def pairs_losses_pallas(boxes_packed, matched_logits, n_valid, alpha, gamma):
    """boxes_packed: [8, N_PAD] (src rows 0-3, tgt rows 4-7);
    matched_logits: [1, N_PAD].  Returns scalar (l1_sum, one_minus_giou_sum,
    vfl_correction_sum)."""
    nvalid = jnp.full((1, 1), n_valid, dtype=jnp.int32)
    l1_s, giou_s, corr_s = pl.pallas_call(
        functools.partial(_pairs_kernel, alpha=float(alpha),
                          gamma=float(gamma)),
        out_shape=(
            jax.ShapeDtypeStruct((1, 1), jnp.float32),
            jax.ShapeDtypeStruct((1, 1), jnp.float32),
            jax.ShapeDtypeStruct((1, 1), jnp.float32),
        ),
        in_specs=[
            pl.BlockSpec(memory_space=pltpu.MemorySpace.SMEM),
            pl.BlockSpec(memory_space=pltpu.MemorySpace.VMEM),
            pl.BlockSpec(memory_space=pltpu.MemorySpace.VMEM),
        ],
        out_specs=(pl.BlockSpec(memory_space=pltpu.MemorySpace.VMEM),) * 3,
    )(nvalid, boxes_packed, matched_logits)
    return l1_s[0, 0], giou_s[0, 0], corr_s[0, 0]


# --------------------------- criterion (glue code) -------------------------- #

class RTDETRCriterionV2Pallas:
    """JAX/Pallas port of RTDETRCriterionv2 forward (main-output losses).

    The Hungarian matcher is an *injected* module in the original code; here
    the matched indices are passed in directly.
    """
    # TODO(synk): Hungarian matching (scipy linear_sum_assignment), the
    # distributed all_reduce of num_boxes, and the aux/dn/enc auxiliary
    # branches are host-side bookkeeping with no Pallas equivalent; the aux
    # branches simply re-apply the same loss kernels with different indices.

    def __init__(self, weight_dict, losses, alpha=0.2, gamma=2.0,
                 num_classes=80, pair_bucket=128):
        self.weight_dict = weight_dict
        self.losses = losses
        self.alpha = alpha
        self.gamma = gamma
        self.num_classes = num_classes
        self.pair_bucket = pair_bucket   # static bucket for matched pairs

    def __call__(self, outputs, targets, indices):
        pred_logits = outputs['pred_logits']          # [B, Q, C]
        pred_boxes = outputs['pred_boxes']            # [B, Q, 4]
        B, Q, C = pred_logits.shape
        assert C == self.num_classes

        # num_boxes is a runtime scalar (never baked into a kernel)
        n_gt = sum(int(t['labels'].shape[0]) for t in targets)
        num_boxes = jnp.maximum(jnp.asarray(float(n_gt), jnp.float32), 1.0)

        # ---- matched pair gather, padded to a static lane-dense bucket ----
        counts = [int(src.shape[0]) for src, _ in indices]
        n_pairs = sum(counts)
        bucket = self.pair_bucket
        n_pad = max(bucket, ((n_pairs + bucket - 1) // bucket) * bucket)
        pad = n_pad - n_pairs

        if n_pairs > 0:
            batch_idx = jnp.concatenate(
                [jnp.full(src.shape, i, jnp.int32)
                 for i, (src, _) in enumerate(indices)])
            src_idx = jnp.concatenate(
                [src.astype(jnp.int32) for src, _ in indices])
            labels_o = jnp.concatenate(
                [t['labels'][J].astype(jnp.int32)
                 for t, (_, J) in zip(targets, indices)])
            tgt_boxes = jnp.concatenate(
                [t['boxes'][J] for t, (_, J) in zip(targets, indices)], axis=0)
        else:
            batch_idx = jnp.zeros((0,), jnp.int32)
            src_idx = jnp.zeros((0,), jnp.int32)
            labels_o = jnp.zeros((0,), jnp.int32)
            tgt_boxes = jnp.zeros((0, 4), jnp.float32)

        def _pad1(x, val):
            return jnp.concatenate([x, jnp.full((pad,), val, x.dtype)])

        # in-bounds padding; padded lanes are masked inside the kernel
        batch_idx_g = _pad1(batch_idx, 0)
        src_idx_g = _pad1(src_idx, 0)
        labels_g = _pad1(labels_o, 0)
        tgt_boxes_p = jnp.concatenate(
            [tgt_boxes.astype(jnp.float32),
             jnp.zeros((pad, 4), jnp.float32)], axis=0)

        src_boxes_p = pred_boxes[batch_idx_g, src_idx_g]      # [N_PAD, 4]
        boxes_packed = jnp.concatenate(
            [src_boxes_p.T.astype(jnp.float32), tgt_boxes_p.T], axis=0)  # [8, N_PAD]

        # matched logits x[b, q, label] for the VFL correction term
        matched_logits = pred_logits[batch_idx_g, src_idx_g, labels_g]  # [N_PAD]
        matched_logits = matched_logits[None, :].astype(jnp.float32)    # [1, N_PAD]

        # ---- box losses (L1 + GIoU) + VFL matched-pair correction ----
        l1_sum, giou_sum, vfl_corr = pairs_losses_pallas(
            boxes_packed, matched_logits, n_pairs, self.alpha, self.gamma)
        loss_bbox = l1_sum / num_boxes
        loss_giou = giou_sum / num_boxes

        # ---- dense VFL term (logits only, no target streams) ----
        partials = vfl_dense_partials_pallas(pred_logits, self.alpha, self.gamma)
        loss_vfl = (jnp.sum(partials) + vfl_corr) / num_boxes

        raw = {}
        if 'vfl' in self.losses:
            raw['loss_vfl'] = loss_vfl
        if 'boxes' in self.losses:
            raw['loss_bbox'] = loss_bbox
            raw['loss_giou'] = loss_giou

        return {k: raw[k] * self.weight_dict[k]
                for k in raw if k in self.weight_dict}


# ----------------------------------- main ----------------------------------- #

if __name__ == "__main__":
    key = jax.random.PRNGKey(0)
    B, Q, C = 2, 16, 20       # batch, queries, classes (small synthetic shapes)
    num_gts = [3, 5]          # GT boxes per image

    k_logit, k_cxy, k_wh, k_lab, _, _ = jax.random.split(key, 6)

    pred_logits = jax.random.normal(k_logit, (B, Q, C), dtype=jnp.float32)
    cxy = jax.random.uniform(k_cxy, (B, Q, 2), minval=0.2, maxval=0.8)
    wh = jax.random.uniform(k_wh, (B, Q, 2), minval=0.05, maxval=0.3)
    pred_boxes = jnp.concatenate([cxy, wh], axis=-1).astype(jnp.float32)

    targets = []
    indices = []
    for b, ng in enumerate(num_gts):
        kl, kc, kw = jax.random.split(jax.random.fold_in(k_lab, b), 3)
        labels = jax.random.randint(kl, (ng,), 0, C, dtype=jnp.int32)
        tcxy = jax.random.uniform(kc, (ng, 2), minval=0.2, maxval=0.8)
        twh = jax.random.uniform(kw, (ng, 2), minval=0.05, maxval=0.3)
        boxes = jnp.concatenate([tcxy, twh], axis=-1).astype(jnp.float32)
        targets.append({'labels': labels, 'boxes': boxes})
        # fixed (identity) matching standing in for the injected Hungarian matcher
        indices.append((jnp.arange(ng, dtype=jnp.int32),
                        jnp.arange(ng, dtype=jnp.int32)))

    criterion = RTDETRCriterionV2Pallas(
        weight_dict={'loss_vfl': 1.0, 'loss_bbox': 5.0, 'loss_giou': 2.0},
        losses=['vfl', 'boxes'],
        alpha=0.2, gamma=2.0, num_classes=C)

    outputs = {'pred_logits': pred_logits, 'pred_boxes': pred_boxes}
    losses = criterion(outputs, targets, indices)
    jax.block_until_ready(losses)
    print("KERNEL_OK")
</pallas_src>

<mosaic_0001>
module attributes {stable_mosaic.version = 11 : i64} {
  func.func @_pairs_kernel(%arg0: memref<1x1xi32, #tpu.memory_space<smem>>, %arg1: memref<8x128xf32, #tpu.memory_space<vmem>>, %arg2: memref<1x128xf32, #tpu.memory_space<vmem>>, %arg3: memref<1x1xf32, #tpu.memory_space<vmem>>, %arg4: memref<1x1xf32, #tpu.memory_space<vmem>>, %arg5: memref<1x1xf32, #tpu.memory_space<vmem>>) attributes {dimension_semantics = [], scalar_prefetch = 0 : i64, scratch_operands = 0 : i64, tpu.core_type = #tpu.core_type<tc>} {
    %c0 = arith.constant 0 : index
    %c0_0 = arith.constant 0 : index
    %0 = memref.load %arg0[%c0, %c0_0] : memref<1x1xi32, #tpu.memory_space<smem>>
    %c0_1 = arith.constant 0 : index
    %c0_2 = arith.constant 0 : index
    %1 = vector.load %arg1[%c0_1, %c0_2] : memref<8x128xf32, #tpu.memory_space<vmem>>, vector<8x128xf32>
    %2 = vector.extract_strided_slice %1 {offsets = [0, 0], sizes = [1, 128], strides = [1, 1]} : vector<8x128xf32> to vector<1x128xf32>
    %3 = vector.extract_strided_slice %1 {offsets = [1, 0], sizes = [1, 128], strides = [1, 1]} : vector<8x128xf32> to vector<1x128xf32>
    %4 = vector.extract_strided_slice %1 {offsets = [2, 0], sizes = [1, 128], strides = [1, 1]} : vector<8x128xf32> to vector<1x128xf32>
    %5 = vector.extract_strided_slice %1 {offsets = [3, 0], sizes = [1, 128], strides = [1, 1]} : vector<8x128xf32> to vector<1x128xf32>
    %6 = vector.extract_strided_slice %1 {offsets = [4, 0], sizes = [1, 128], strides = [1, 1]} : vector<8x128xf32> to vector<1x128xf32>
    %7 = vector.extract_strided_slice %1 {offsets = [5, 0], sizes = [1, 128], strides = [1, 1]} : vector<8x128xf32> to vector<1x128xf32>
    %8 = vector.extract_strided_slice %1 {offsets = [6, 0], sizes = [1, 128], strides = [1, 1]} : vector<8x128xf32> to vector<1x128xf32>
    %9 = vector.extract_strided_slice %1 {offsets = [7, 0], sizes = [1, 128], strides = [1, 1]} : vector<8x128xf32> to vector<1x128xf32>
    %10 = arith.subf %2, %6 : vector<1x128xf32>
    %11 = math.absf %10 : vector<1x128xf32>
    %12 = arith.subf %3, %7 : vector<1x128xf32>
    %13 = math.absf %12 : vector<1x128xf32>
    %14 = arith.addf %11, %13 : vector<1x128xf32>
    %15 = arith.subf %4, %8 : vector<1x128xf32>
    %16 = math.absf %15 : vector<1x128xf32>
    %17 = arith.addf %14, %16 : vector<1x128xf32>
    %18 = arith.subf %5, %9 : vector<1x128xf32>
    %19 = math.absf %18 : vector<1x128xf32>
    %20 = arith.addf %17, %19 : vector<1x128xf32>
    %cst = arith.constant 5.000000e-01 : f32
    %21 = vector.broadcast %cst : f32 to vector<1x128xf32>
    %22 = arith.mulf %21, %4 : vector<1x128xf32>
    %23 = arith.subf %2, %22 : vector<1x128xf32>
    %cst_3 = arith.constant 5.000000e-01 : f32
    %24 = vector.broadcast %cst_3 : f32 to vector<1x128xf32>
    %25 = arith.mulf %24, %5 : vector<1x128xf32>
    %26 = arith.subf %3, %25 : vector<1x128xf32>
    %cst_4 = arith.constant 5.000000e-01 : f32
    %27 = vector.broadcast %cst_4 : f32 to vector<1x128xf32>
    %28 = arith.mulf %27, %4 : vector<1x128xf32>
    %29 = arith.addf %2, %28 : vector<1x128xf32>
    %cst_5 = arith.constant 5.000000e-01 : f32
    %30 = vector.broadcast %cst_5 : f32 to vector<1x128xf32>
    %31 = arith.mulf %30, %5 : vector<1x128xf32>
    %32 = arith.addf %3, %31 : vector<1x128xf32>
    %cst_6 = arith.constant 5.000000e-01 : f32
    %33 = vector.broadcast %cst_6 : f32 to vector<1x128xf32>
    %34 = arith.mulf %33, %8 : vector<1x128xf32>
    %35 = arith.subf %6, %34 : vector<1x128xf32>
    %cst_7 = arith.constant 5.000000e-01 : f32
    %36 = vector.broadcast %cst_7 : f32 to vector<1x128xf32>
    %37 = arith.mulf %36, %9 : vector<1x128xf32>
    %38 = arith.subf %7, %37 : vector<1x128xf32>
    %cst_8 = arith.constant 5.000000e-01 : f32
    %39 = vector.broadcast %cst_8 : f32 to vector<1x128xf32>
    %40 = arith.mulf %39, %8 : vector<1x128xf32>
    %41 = arith.addf %6, %40 : vector<1x128xf32>
    %cst_9 = arith.constant 5.000000e-01 : f32
    %42 = vector.broadcast %cst_9 : f32 to vector<1x128xf32>
    %43 = arith.mulf %42, %9 : vector<1x128xf32>
    %44 = arith.addf %7, %43 : vector<1x128xf32>
    %45 = arith.subf %29, %23 : vector<1x128xf32>
    %46 = arith.subf %32, %26 : vector<1x128xf32>
    %47 = arith.mulf %45, %46 : vector<1x128xf32>
    %48 = arith.subf %41, %35 : vector<1x128xf32>
    %49 = arith.subf %44, %38 : vector<1x128xf32>
    %50 = arith.mulf %48, %49 : vector<1x128xf32>
    %51 = arith.maximumf %23, %35 : vector<1x128xf32>
    %52 = arith.maximumf %26, %38 : vector<1x128xf32>
    %53 = arith.minimumf %29, %41 : vector<1x128xf32>
    %54 = arith.minimumf %32, %44 : vector<1x128xf32>
    %55 = arith.subf %53, %51 : vector<1x128xf32>
    %cst_10 = arith.constant 0.000000e+00 : f32
    %56 = vector.broadcast %cst_10 : f32 to vector<1x128xf32>
    %57 = arith.maximumf %55, %56 : vector<1x128xf32>
    %58 = arith.subf %54, %52 : vector<1x128xf32>
    %cst_11 = arith.constant 0.000000e+00 : f32
    %59 = vector.broadcast %cst_11 : f32 to vector<1x128xf32>
    %60 = arith.maximumf %58, %59 : vector<1x128xf32>
    %61 = arith.mulf %57, %60 : vector<1x128xf32>
    %62 = arith.addf %47, %50 : vector<1x128xf32>
    %63 = arith.subf %62, %61 : vector<1x128xf32>
    %cst_12 = arith.constant 9.99999993E-9 : f32
    %64 = vector.broadcast %cst_12 : f32 to vector<1x128xf32>
    %65 = arith.maximumf %63, %64 : vector<1x128xf32>
    %66 = arith.divf %61, %65 : vector<1x128xf32>
    %67 = arith.minimumf %23, %35 : vector<1x128xf32>
    %68 = arith.minimumf %26, %38 : vector<1x128xf32>
    %69 = arith.maximumf %29, %41 : vector<1x128xf32>
    %70 = arith.maximumf %32, %44 : vector<1x128xf32>
    %71 = arith.subf %69, %67 : vector<1x128xf32>
    %72 = arith.subf %70, %68 : vector<1x128xf32>
    %73 = arith.mulf %71, %72 : vector<1x128xf32>
    %74 = arith.subf %73, %63 : vector<1x128xf32>
    %cst_13 = arith.constant 9.99999993E-9 : f32
    %75 = vector.broadcast %cst_13 : f32 to vector<1x128xf32>
    %76 = arith.maximumf %73, %75 : vector<1x128xf32>
    %77 = arith.divf %74, %76 : vector<1x128xf32>
    %78 = arith.subf %66, %77 : vector<1x128xf32>
    %79 = tpu.iota {dimensions = array<i32: 1>} : vector<1x128xi32>
    %80 = vector.broadcast %0 : i32 to vector<1x128xi32>
    %81 = arith.cmpi slt, %79, %80 : vector<1x128xi32>
    %82 = arith.extui %81 : vector<1x128xi1> to vector<1x128xi32>
    %83 = arith.sitofp %82 : vector<1x128xi32> to vector<1x128xf32>
    %84 = arith.mulf %20, %83 : vector<1x128xf32>
    %85 = vector.shape_cast %84 : vector<1x128xf32> to vector<1x1x128xf32>
    %cst_14 = arith.constant dense<0.000000e+00> : vector<1xf32>
    %86 = vector.multi_reduction <add>, %85, %cst_14 [1, 2] : vector<1x1x128xf32> to vector<1xf32>
    %87 = vector.shape_cast %86 : vector<1xf32> to vector<1x1x1xf32>
    %88 = vector.extract %87[0, 0, 0] : f32 from vector<1x1x1xf32>
    %89 = vector.broadcast %88 : f32 to vector<1x1xf32>
    %c0_15 = arith.constant 0 : index
    %c0_16 = arith.constant 0 : index
    %90 = vector.load %arg3[%c0_15, %c0_16] : memref<1x1xf32, #tpu.memory_space<vmem>>, vector<1x1xf32>
    tpu.vector_store %arg3[%c0_15, %c0_16], %89 {strides = array<i32>} : memref<1x1xf32, #tpu.memory_space<vmem>>, vector<1x1xf32>,
    %cst_17 = arith.constant 1.000000e+00 : f32
    %91 = vector.broadcast %cst_17 : f32 to vector<1x128xf32>
    %92 = arith.subf %91, %78 : vector<1x128xf32>
    %93 = arith.mulf %92, %83 : vector<1x128xf32>
    %94 = vector.shape_cast %93 : vector<1x128xf32> to vector<1x1x128xf32>
    %cst_18 = arith.constant dense<0.000000e+00> : vector<1xf32>
    %95 = vector.multi_reduction <add>, %94, %cst_18 [1, 2] : vector<1x1x128xf32> to vector<1xf32>
    %96 = vector.shape_cast %95 : vector<1xf32> to vector<1x1x1xf32>
    %97 = vector.extract %96[0, 0, 0] : f32 from vector<1x1x1xf32>
    %98 = vector.broadcast %97 : f32 to vector<1x1xf32>
    %c0_19 = arith.constant 0 : index
    %c0_20 = arith.constant 0 : index
    %99 = vector.load %arg4[%c0_19, %c0_20] : memref<1x1xf32, #tpu.memory_space<vmem>>, vector<1x1xf32>
    tpu.vector_store %arg4[%c0_19, %c0_20], %98 {strides = array<i32>} : memref<1x1xf32, #tpu.memory_space<vmem>>, vector<1x1xf32>,
    %c0_21 = arith.constant 0 : index
    %c0_22 = arith.constant 0 : index
    %100 = vector.load %arg2[%c0_21, %c0_22] : memref<1x128xf32, #tpu.memory_space<vmem>>, vector<1x128xf32>
    %101 = math.absf %100 : vector<1x128xf32>
    %cst_23 = arith.constant 0.000000e+00 : f32
    %102 = vector.broadcast %cst_23 : f32 to vector<1x128xf32>
    %103 = arith.subf %102, %101 : vector<1x128xf32>
    %104 = math.exp %103 : vector<1x128xf32>
    %cst_24 = arith.constant 1.000000e+00 : f32
    %105 = vector.broadcast %cst_24 : f32 to vector<1x128xf32>
    %106 = arith.addf %105, %104 : vector<1x128xf32>
    %107 = tpu.reciprocal %106 : vector<1x128xf32> -> vector<1x128xf32>
    %cst_25 = arith.constant 0.000000e+00 : f32
    %108 = vector.broadcast %cst_25 : f32 to vector<1x128xf32>
    %109 = arith.cmpf oge, %100, %108 : vector<1x128xf32>
    %110 = arith.mulf %104, %107 : vector<1x128xf32>
    %111 = arith.select %109, %107, %110 : vector<1x128xi1>, vector<1x128xf32>
    %112 = arith.mulf %111, %111 : vector<1x128xf32>
    %cst_26 = arith.constant 0.000000e+00 : f32
    %113 = vector.broadcast %cst_26 : f32 to vector<1x128xf32>
    %114 = arith.maximumf %100, %113 : vector<1x128xf32>
    %115 = math.log %106 : vector<1x128xf32>
    %116 = arith.addf %114, %115 : vector<1x128xf32>
    %117 = arith.mulf %100, %66 : vector<1x128xf32>
    %118 = arith.subf %116, %117 : vector<1x128xf32>
    %119 = arith.mulf %66, %118 : vector<1x128xf32>
    %cst_27 = arith.constant 2.000000e-01 : f32
    %120 = vector.broadcast %cst_27 : f32 to vector<1x128xf32>
    %121 = arith.mulf %120, %112 : vector<1x128xf32>
    %122 = arith.mulf %121, %116 : vector<1x128xf32>
    %123 = arith.subf %119, %122 : vector<1x128xf32>
    %124 = arith.mulf %123, %83 : vector<1x128xf32>
    %125 = vector.shape_cast %124 : vector<1x128xf32> to vector<1x1x128xf32>
    %cst_28 = arith.constant dense<0.000000e+00> : vector<1xf32>
    %126 = vector.multi_reduction <add>, %125, %cst_28 [1, 2] : vector<1x1x128xf32> to vector<1xf32>
    %127 = vector.shape_cast %126 : vector<1xf32> to vector<1x1x1xf32>
    %128 = vector.extract %127[0, 0, 0] : f32 from vector<1x1x1xf32>
    %129 = vector.broadcast %128 : f32 to vector<1x1xf32>
    %c0_29 = arith.constant 0 : index
    %c0_30 = arith.constant 0 : index
    %130 = vector.load %arg5[%c0_29, %c0_30] : memref<1x1xf32, #tpu.memory_space<vmem>>, vector<1x1xf32>
    tpu.vector_store %arg5[%c0_29, %c0_30], %129 {strides = array<i32>} : memref<1x1xf32, #tpu.memory_space<vmem>>, vector<1x1xf32>,
    return
  }
}

</mosaic_0001>

<llo_original>
// kernel: tpu_custom_call.1
$region0: #{tpu_custom_call.1}
  #allocation0 [shape = 'u32[]', space=smem, size = 0x4, offset = 0x4, fixed_abs, tag = 'smem constant byte address 0x4 - core index']
  #allocation1 [shape = 'u32[72,128]{1,0:T(1,128)}', space=vmem, size = 0x9000, scoped, tag = 'internal scratch']
  #allocation2 [shape = 's32[1,1]{1,0:T(1,128)S(6)}', space=smem, size = 0x200, scoped, tag = 'scoped memory for tpu_custom_call.1']
  %s0 = inlined_call_operand.<no memory space> [shape: s32[1,1], index: 0, kind: input, shape index: {}]
  %s1 = inlined_call_operand.hbm [shape: f32[8,128], index: 1, kind: input, shape index: {}]
  %s2 = inlined_call_operand.vmem [shape: f32[1,128], index: 2, kind: input, shape index: {}]
  %s3 = inlined_call_operand.hbm [shape: f32[1,1], index: 3, kind: output, shape index: {0}]
  %s4 = inlined_call_operand.hbm [shape: f32[1,1], index: 4, kind: output, shape index: {1}]
  %s5 = inlined_call_operand.hbm [shape: f32[1,1], index: 5, kind: output, shape index: {2}]
  %6 = xla_tuple %s3, %s4, %s5
  %s7 = sld [smem:[#allocation0]]
  $region42: #{tpu_custom_call.1} parent=0
    _
  %s9 = ssub.s32 1, %s7
  %s10 = scalar_select 0, %s9, %s7
  %11 = sst [smem:[#allocation2]] %s0
  $region1: #{tpu_custom_call.1} parent=0
    #allocation3 [shape = 'u8[4096]{0}', space=vmem, size = 0x1000, scoped, tag = 'input window, operand 1, single buffered']
    #allocation4 [shape = 's32[1]{0}', space=sflag, size = 0x4, scoped, tag = 'scoped memory for tpu_custom_call.1']
    #allocation5 [shape = 's32[1]{0}', space=sflag, size = 0x4, scoped, tag = 'scoped memory for tpu_custom_call.1']
    #allocation6 [shape = 'u8[512]{0}', space=vmem, size = 0x400, scoped, tag = 'output window, operand 0, single buffered']
    #allocation7 [shape = 'u8[512]{0}', space=vmem, size = 0x400, scoped, tag = 'output window, operand 1, single buffered']
    #allocation8 [shape = 's32[1]{0}', space=sflag, size = 0x4, scoped, tag = 'scoped memory for tpu_custom_call.1']
    #allocation9 [shape = 'u8[512]{0}', space=vmem, size = 0x400, scoped, tag = 'output window, operand 2, single buffered']
    %12 = vsyncpa [#allocation4], 0
    %13 = vsyncpa [#allocation5], 0
    %14 = vsyncpa [#allocation8], 0
    // Predicated region
    $region2: #{tpu_custom_call.1} parent=1 // pred_check
      _
    $region3: #{tpu_custom_call.1} parent=1 // pred_check_branch
      %16 = sbr.rel (0) target = $region5
    $region4: #{tpu_custom_call.1} parent=1 // pred_region
      _
    $region5: #{tpu_custom_call.1} parent=1 // pred_fallthru
      _
    // Predicated region
    $region6: #{tpu_custom_call.1} parent=1 // pred_check
      _
    $region7: #{tpu_custom_call.1} parent=1 // pred_check_branch
      %18 = sbr.rel (0) target = $region9
    $region8: #{tpu_custom_call.1} parent=1 // pred_region
      %20 = vsyncadd [#allocation4], 0
      %s22 = sshll.u32 %s1, 4
      %s23 = int_to_ptr.hbm [resolvable:$true] %s22
      %s24 = sshll.u32 [#allocation3], 4
      %s25 = int_to_ptr.vmem [resolvable:$true] %s24
      %27 = dma.hbm_to_vmem [thread:$0]  %s23, 128, %s25, [#allocation4]
    $region9: #{tpu_custom_call.1} parent=1 // pred_fallthru
      _
    // Predicated region
    $region10: #{tpu_custom_call.1} parent=1 // pred_check
      _
    $region11: #{tpu_custom_call.1} parent=1 // pred_check_branch
      %29 = sbr.rel (0) target = $region13
    $region12: #{tpu_custom_call.1} parent=1 // pred_region
      _
    $region13: #{tpu_custom_call.1} parent=1 // pred_fallthru
      _
    // Predicated region
    $region14: #{tpu_custom_call.1} parent=1 // pred_check
      _
    $region15: #{tpu_custom_call.1} parent=1 // pred_check_branch
      %31 = sbr.rel (0) target = $region17
    $region16: #{tpu_custom_call.1} parent=1 // pred_region
      %33 = dma.done [#allocation4], 128
    $region17: #{tpu_custom_call.1} parent=1 // pred_fallthru
      _
    %s34 = sld [smem:[#allocation2]]
    %v35 = vld [vmem:[#allocation3] sm:$0xff]
    %v37 = vrot.slane %v35, 4
    %v39 = vsub.f32 %v35, %v37
    %v40 = vand.u32 2147483647, %v39
    %v42 = vrot.slane %v40, 1
    %v44 = vadd.f32 %v40, %v42
    %v45 = vrot.slane %v40, 2
    %v47 = vadd.f32 %v44, %v45
    %v48 = vrot.slane %v40, 3
    %v50 = vadd.f32 %v47, %v48
    %v51 = vmul.f32 %v35, 0.5
    %v53 = vrot.slane %v51, 2
    %v55 = vsub.f32 %v35, %v53
    %v56 = vadd.f32 %v35, %v53
    %v57 = vsub.f32 %v56, %v55
    %v59 = vrot.slane %v57, 1
    %v61 = vmul.f32 %v57, %v59
    %v63 = vrot.slane %v55, 4
    %v65 = vmax.f32 %v55, %v63
    %v67 = vrot.slane %v56, 4
    %v69 = vmin.f32 %v56, %v67
    %v70 = vsub.f32 %v69, %v65
    %v71 = vmax.f32 %v70, 0.0
    %v73 = vrot.slane %v71, 1
    %v75 = vmul.f32 %v71, %v73
    %v77 = vrot.slane %v61, 4
    %v79 = vadd.f32 %v61, %v77
    %v80 = vsub.f32 %v79, %v75
    %v81 = vmax.f32 %v80, 1e-08
    %v82 = vrcp.pop %v81
    %v83 = vmul.f32 %v81, %v82
    %v84 = vsub.f32 1.0, %v83
    %v85 = vmul.f32 %v82, %v84
    %v86 = vadd.f32 %v82, %v85
    %vm87 = vweird.f32 %v81
    %vm88 = vweird.f32 %v82
    %vm89 = vmor %vm87, %vm88
    %v90 = vsel %vm89, %v82, %v86
    %v91 = vand.u32 2147483647, %v81
    %vm92 = vcmp.eq.f32.partialorder %v91, 8.507059e+37
    %v93 = vand.u32 %v81, 2147483648
    %v94 = vor.u32 1.1754944e-38, %v93
    %v95 = vsel %vm92, %v94, %v90
    %v96 = vmul.f32 %v75, %v95
    %v97 = vmin.f32 %v55, %v63
    %v98 = vmax.f32 %v56, %v67
    %v99 = vsub.f32 %v98, %v97
    %v101 = vrot.slane %v99, 1
    %v103 = vmul.f32 %v99, %v101
    %v104 = vsub.f32 %v103, %v80
    %v105 = vmax.f32 %v103, 1e-08
    %v106 = vrcp.pop %v105
    %v107 = vmul.f32 %v105, %v106
    %v108 = vsub.f32 1.0, %v107
    %v109 = vmul.f32 %v106, %v108
    %v110 = vadd.f32 %v106, %v109
    %vm111 = vweird.f32 %v105
    %vm112 = vweird.f32 %v106
    %vm113 = vmor %vm111, %vm112
    %v114 = vsel %vm113, %v106, %v110
    %v115 = vand.u32 2147483647, %v105
    %vm116 = vcmp.eq.f32.partialorder %v115, 8.507059e+37
    %v117 = vand.u32 %v105, 2147483648
    %v118 = vor.u32 1.1754944e-38, %v117
    %v119 = vsel %vm116, %v118, %v114
    %v120 = vmul.f32 %v104, %v119
    %v121 = vsub.f32 %v96, %v120
    %v122 = vlaneseq
    %v123 = vand.u32 %v122, 127
    %v124 = vstv %s34
    %vm125 = vcmp.lt.s32.totalorder %v123, %v124
    %v126 = vsel %vm125, 1, 0
    %v127 = vcvt.s32.f32 %v126
    %v128 = vmul.f32 %v50, %v127
    %vm129 = vcmask 1040384
    %v130 = vsel %vm129, %v128, 0.0
    %131 = vadd.xlane.f32.xlu0 %v130
    %v132 = vpop.xlane.xlu0 %131
    %v133 = vrot.slane %v132, 4
    %v134 = vadd.f32 %v132, %v133
    %v135 = vrot.slane %v134, 2
    %v136 = vadd.f32 %v134, %v135
    %v137 = vrot.slane %v136, 1
    %v138 = vadd.f32 %v136, %v137
    %s139 = vtos %v138
    %v140 = vstv %s139
    %vm141 = vcmask 0
    %142 = vst.msk [vmem:[#allocation6] sm:$0x1] %vm141, %v140
    %v143 = vsub.f32 1.0, %v121
    %v144 = vmul.f32 %v143, %v127
    %v145 = vsel %vm129, %v144, 0.0
    %146 = vadd.xlane.f32.xlu0 %v145
    %v147 = vpop.xlane.xlu0 %146
    %v148 = vrot.slane %v147, 4
    %v149 = vadd.f32 %v147, %v148
    %v150 = vrot.slane %v149, 2
    %v151 = vadd.f32 %v149, %v150
    %v152 = vrot.slane %v151, 1
    %v153 = vadd.f32 %v151, %v152
    %s154 = vtos %v153
    %v155 = vstv %s154
    %156 = vst.msk [vmem:[#allocation7] sm:$0x1] %vm141, %v155
    %v157 = vld [vmem:[%s2] sm:$0x1]
    %v158 = vand.u32 2147483647, %v157
    %v159 = vsub.f32 0.0, %v158
    %v160 = vmul.f32 %v159, 1.442695
    %v161 = vpow.pop %v160
    %v162 = vadd.f32 %v161, 1.0
    %v163 = vrcp.pop %v162
    %v164 = vmul.f32 %v162, %v163
    %v165 = vsub.f32 1.0, %v164
    %v166 = vmul.f32 %v163, %v165
    %v167 = vadd.f32 %v163, %v166
    %vm168 = vweird.f32 %v162
    %vm169 = vweird.f32 %v163
    %vm170 = vmor %vm168, %vm169
    %v171 = vsel %vm170, %v163, %v167
    %v172 = vand.u32 2147483647, %v162
    %vm173 = vcmp.eq.f32.partialorder %v172, 8.507059e+37
    %v174 = vand.u32 %v162, 2147483648
    %v175 = vor.u32 1.1754944e-38, %v174
    %v176 = vsel %vm173, %v175, %v171
    %vm177 = vcmp.ge.f32.partialorder %v157, 0.0
    %v178 = vmul.f32 %v161, %v176
    %v179 = vsel %vm177, %v176, %v178
    %v180 = vmul.f32 %v179, %v179
    %v181 = vmax.f32 %v157, 0.0
    %v182 = vlog2.pop %v162
    %v183 = vmul.f32 %v182, 0.6931472
    %v184 = vadd.f32 %v181, %v183
    %v185 = vmul.f32 %v157, %v96
    %v186 = vsub.f32 %v184, %v185
    %v187 = vmul.f32 %v96, %v186
    %v188 = vmul.f32 %v180, 0.2
    %v189 = vmul.f32 %v188, %v184
    %v190 = vsub.f32 %v187, %v189
    %v191 = vmul.f32 %v190, %v127
    %v192 = vsel %vm129, %v191, 0.0
    %193 = vadd.xlane.f32.xlu0 %v192
    %v194 = vpop.xlane.xlu0 %193
    %v195 = vrot.slane %v194, 4
    %v196 = vadd.f32 %v194, %v195
    %v197 = vrot.slane %v196, 2
    %v198 = vadd.f32 %v196, %v197
    %v199 = vrot.slane %v198, 1
    %v200 = vadd.f32 %v198, %v199
    %s201 = vtos %v200
    %v202 = vstv %s201
    %203 = vst.msk [vmem:[#allocation9] sm:$0x1] %vm141, %v202
    // Predicated region
    $region18: #{tpu_custom_call.1} parent=1 // pred_check
      _
    $region19: #{tpu_custom_call.1} parent=1 // pred_check_branch
      %205 = sbr.rel (0) target = $region21
    $region20: #{tpu_custom_call.1} parent=1 // pred_region
      %207 = vsyncadd [#allocation5], 0
      %s209 = sshll.u32 [#allocation6], 4
      %s210 = int_to_ptr.vmem [resolvable:$true] %s209
      %s211 = sshll.u32 %s3, 4
      %s212 = int_to_ptr.hbm [resolvable:$true] %s211
      %214 = dma.vmem_to_hbm [thread:$0]  %s210, 16, %s212, [#allocation5]
    $region21: #{tpu_custom_call.1} parent=1 // pred_fallthru
      _
    // Predicated region
    $region22: #{tpu_custom_call.1} parent=1 // pred_check
      _
    $region23: #{tpu_custom_call.1} parent=1 // pred_check_branch
      %216 = sbr.rel (0) target = $region25
    $region24: #{tpu_custom_call.1} parent=1 // pred_region
      %218 = vsyncadd [#allocation8], 0
      %s220 = sshll.u32 [#allocation7], 4
      %s221 = int_to_ptr.vmem [resolvable:$true] %s220
      %s222 = sshll.u32 %s4, 4
      %s223 = int_to_ptr.hbm [resolvable:$true] %s222
      %225 = dma.vmem_to_hbm [thread:$0]  %s221, 16, %s223, [#allocation8]
    $region25: #{tpu_custom_call.1} parent=1 // pred_fallthru
      _
    // Predicated region
    $region26: #{tpu_custom_call.1} parent=1 // pred_check
      _
    $region27: #{tpu_custom_call.1} parent=1 // pred_check_branch
      %227 = sbr.rel (0) target = $region29
    $region28: #{tpu_custom_call.1} parent=1 // pred_region
      %229 = vsyncadd [#allocation8], 0
      %s231 = sshll.u32 [#allocation9], 4
      %s232 = int_to_ptr.vmem [resolvable:$true] %s231
      %s233 = sshll.u32 %s5, 4
      %s234 = int_to_ptr.hbm [resolvable:$true] %s233
      %236 = dma.vmem_to_hbm [thread:$0]  %s232, 16, %s234, [#allocation8]
    $region29: #{tpu_custom_call.1} parent=1 // pred_fallthru
      _
    // Predicated region
    $region30: #{tpu_custom_call.1} parent=1 // pred_check
      _
    $region31: #{tpu_custom_call.1} parent=1 // pred_check_branch
      %238 = sbr.rel (0) target = $region33
    $region32: #{tpu_custom_call.1} parent=1 // pred_region
      %240 = dma.done [#allocation5], 16
    $region33: #{tpu_custom_call.1} parent=1 // pred_fallthru
      _
    // Predicated region
    $region34: #{tpu_custom_call.1} parent=1 // pred_check
      _
    $region35: #{tpu_custom_call.1} parent=1 // pred_check_branch
      %242 = sbr.rel (0) target = $region37
    $region36: #{tpu_custom_call.1} parent=1 // pred_region
      %244 = dma.done [#allocation8], 16
    $region37: #{tpu_custom_call.1} parent=1 // pred_fallthru
      _
    // Predicated region
    $region38: #{tpu_custom_call.1} parent=1 // pred_check
      _
    $region39: #{tpu_custom_call.1} parent=1 // pred_check_branch
      %246 = sbr.rel (0) target = $region41
    $region40: #{tpu_custom_call.1} parent=1 // pred_region
      %248 = dma.done [#allocation8], 16
    $region41: #{tpu_custom_call.1} parent=1 // pred_fallthru
      _
    %249 = vsyncpa [#allocation4], 1
    %250 = vsyncpa [#allocation5], 1
    %251 = vsyncpa [#allocation8], 1

</llo_original>
